<compile_context>
chip_gen: v7x
topology: tpu7x:2x2x1
jax: 0.10.0
libtpu: 0.0.40
codegen_flags: <defaults>
</compile_context>

<pallas_src>
import functools

import jax
import jax.numpy as jnp
from jax.experimental import pallas as pl
from jax.experimental.pallas import tpu as pltpu

# Fixed high-pass kernel of the PyTorch module: [[-1,2,-1],[2,0,2],[-1,2,-1]]/4
_KB = ((-0.25, 0.5, -0.25),
       (0.5, 0.0, 0.5),
       (-0.25, 0.5, -0.25))

_MASK24 = (1 << 24) - 1


def _keep_mask(seed_u32, elem_idx, H, W, keep_threshold):
    """Bernoulli keep-mask for one batch element from a counter hash.

    Portable (interpret + Mosaic): only iota / uint32 mul / xor / shift / cmp.
    """
    row = jax.lax.broadcasted_iota(jnp.int32, (H, W), 0)
    col = jax.lax.broadcasted_iota(jnp.int32, (H, W), 1)
    gidx = (elem_idx * H + row) * W + col                       # global pixel id
    h = gidx.astype(jnp.uint32) + seed_u32 * jnp.uint32(0x9E3779B9)
    # lowbias32 finalizer (decorrelates nearby counters / seeds)
    h = h ^ (h >> 16)
    h = h * jnp.uint32(0x7FEB352D)
    h = h ^ (h >> 15)
    h = h * jnp.uint32(0x846CA68B)
    h = h ^ (h >> 16)
    return (h & jnp.uint32(_MASK24)) < jnp.uint32(keep_threshold)


def _uniform_dropout_kernel(seed_ref, x_ref, o_ref, *,
                            keep_threshold, in_sel, out_sel, passthrough):
    """One (Bt, Cblk, H, W) block per grid step.

    seed_ref : SMEM (1,) int32                       scalar-prefetch PRNG seed
    x_ref    : VMEM (Bt, Cin,  H, W) input block     (Cin = |sel| or C)
    o_ref    : VMEM (Bt, Cout, H, W) output block    (aliases the input in HBM)
    """
    Bt, _, H, W = x_ref.shape
    seed_u32 = seed_ref[0].astype(jnp.uint32) + jnp.uint32(1)

    # --- sum selected channels, then build the 1-px reflect halo in VMEM ----
    xs = x_ref[:, in_sel[0]].astype(jnp.float32)                # (Bt, H, W)
    for c in in_sel[1:]:
        xs = xs + x_ref[:, c].astype(jnp.float32)
    rows = jnp.concatenate(
        [xs[:, 1:2, :], xs, xs[:, H - 2:H - 1, :]], axis=1)           # (Bt,H+2,W)
    xp = jnp.concatenate(
        [rows[:, :, 1:2], rows, rows[:, :, W - 2:W - 1]], axis=2)     # (Bt,H+2,W+2)

    # --- separable high-pass: ([1,0,1]^T (x) [-1,2,-1] + [0,1,0]^T (x) [2,0,2]) / 4
    hcol = 2.0 * xp[:, :, 1:W + 1] - xp[:, :, 0:W] - xp[:, :, 2:W + 2]  # (Bt,H+2,W)
    x_kb = (0.25 * (hcol[:, 0:H] + hcol[:, 2:H + 2])
            + 0.5 * (xp[:, 1:H + 1, 0:W] + xp[:, 1:H + 1, 2:W + 2]))    # (Bt,H,W)

    # --- blend the selected channels with a boolean keep-mask ---------------
    for i in range(Bt):
        keep = _keep_mask(seed_u32, pl.program_id(0) * Bt + i, H, W,
                          keep_threshold)                                # (H,W) bool
        for ci, co in zip(in_sel, out_sel):
            o_ref[i, co] = jnp.where(
                keep, x_ref[i, ci].astype(jnp.float32), x_kb[i]
            ).astype(o_ref.dtype)

    # Pass-through copies are only needed when `sel` is not a contiguous,
    # aligned range; otherwise the BlockSpecs skip those channels entirely and
    # the aliased HBM buffer keeps them with zero traffic.
    for co, ci in passthrough:
        o_ref[:, co] = x_ref[:, ci]


def _pick_block_batch(B, ch_per_step, H, W, itemsize, budget_bytes=8 << 20):
    """Largest divisor of B whose double-buffered in+out blocks fit the budget,
    keeping >= 2 grid steps when possible (both v7x TensorCores get work)."""
    per_elem = 2 * ch_per_step * H * W * itemsize     # double-buffered in + out
    bt = 1
    for cand in range(1, B + 1):
        if cand * per_elem > budget_bytes:
            break
        if B % cand == 0 and (B // cand >= 2 or B == 1):
            bt = cand
    return bt


def uniform_dropout(x, p, drop_channel, seed=0):
    """Pallas implementation of UniformDropout.forward on NCHW input.

    Keep probability = 1 - p, mask shared across the selected channels, dropped
    pixels replaced by the fixed 3x3 high-pass response (reflect padding)
    summed over the selected channels; non-selected channels pass through
    untouched.  No 1/keep_p rescaling (matches the PyTorch module).
    """
    B, C, H, W = x.shape
    if H < 2 or W < 2:
        raise ValueError("reflect padding needs H >= 2 and W >= 2")
    keep_p = min(max(1.0 - float(p), 0.0), 1.0)
    keep_threshold = int(round(keep_p * (1 << 24)))     # 0 -> all drop, 2^24 -> all keep

    sel = tuple(sorted(int(c) for c in drop_channel))
    nsel = len(sel)
    c0 = sel[0]
    # Contiguous + aligned selection -> BlockSpecs cover only those channels.
    aligned = sel == tuple(range(c0, c0 + nsel)) and c0 % nsel == 0

    cin = nsel if aligned else C
    cout = nsel if aligned else C
    bt = _pick_block_batch(B, cin + cout, H, W, x.dtype.itemsize)
    grid = (B // bt,)

    if aligned:
        cblk = c0 // nsel
        in_spec = pl.BlockSpec((bt, nsel, H, W), lambda b, sref: (b, cblk, 0, 0))
        out_spec = pl.BlockSpec((bt, nsel, H, W), lambda b, sref: (b, cblk, 0, 0))
        in_sel = tuple(range(nsel))
        out_sel = tuple(range(nsel))
        passthrough = ()
    else:
        in_spec = pl.BlockSpec((bt, C, H, W), lambda b, sref: (b, 0, 0, 0))
        out_spec = pl.BlockSpec((bt, C, H, W), lambda b, sref: (b, 0, 0, 0))
        in_sel = sel
        out_sel = sel
        passthrough = tuple((c, c) for c in range(C) if c not in sel)

    kernel = functools.partial(
        _uniform_dropout_kernel,
        keep_threshold=keep_threshold,
        in_sel=in_sel, out_sel=out_sel, passthrough=passthrough)

    seed_arr = jnp.asarray([seed], dtype=jnp.int32)

    return pl.pallas_call(
        kernel,
        out_shape=jax.ShapeDtypeStruct((B, C, H, W), x.dtype),
        grid_spec=pltpu.PrefetchScalarGridSpec(
            num_scalar_prefetch=1,
            grid=grid,
            in_specs=[in_spec],
            out_specs=out_spec,
        ),
        # Output aliases the input HBM buffer (arg index 1: index 0 is the
        # prefetched seed).  Channel blocks the kernel never touches keep their
        # original values with no extra HBM traffic.
        input_output_aliases={1: 0},
        compiler_params=pltpu.CompilerParams(
            dimension_semantics=("parallel",),
            # Above the v5e 16 MiB scoped default, comfortably holds the
            # <= 8 MiB double-buffered blocks, and within every generation's
            # physical VMEM (incl. v7x's 64 MiB).
            vmem_limit_bytes=32 * 1024 * 1024,
        ),
    )(seed_arr, x)


if __name__ == "__main__":
    key = jax.random.PRNGKey(0)
    B, C, H, W = 2, 4, 16, 16
    p = 0.5                      # module arg: keep probability = 1 - p
    drop_channel = [0, 1]

    x = jax.random.normal(key, (B, C, H, W), jnp.float32)
    y = jax.block_until_ready(uniform_dropout(x, p, drop_channel, seed=123))

    assert y.shape == (B, C, H, W), y.shape
    assert bool(jnp.all(jnp.isfinite(y)))

    # Non-selected channels must pass through untouched (exercises the aliased,
    # never-written channel blocks).
    other = jnp.array([c for c in range(C) if c not in drop_channel])
    assert bool(jnp.allclose(y[:, other], x[:, other]))

    # Reference high-pass response (independent 8-tap formulation).
    xp = jnp.pad(x[:, jnp.array(drop_channel)],
                 ((0, 0), (0, 0), (1, 1), (1, 1)), mode="reflect")
    xs = jnp.sum(xp, axis=1)                                  # (B, H+2, W+2)
    x_kb = jnp.zeros((B, H, W), jnp.float32)
    for dy in range(3):
        for dx in range(3):
            kv = _KB[dy][dx]
            if kv != 0.0:
                x_kb = x_kb + kv * xs[:, dy:dy + H, dx:dx + W]

    # Selected channels: every pixel equals either the original value (kept)
    # or the high-pass response over the selected channels (dropped) -- same
    # semantics as the PyTorch module.
    for c in drop_channel:
        is_kept = jnp.isclose(y[:, c], x[:, c], atol=1e-5)
        is_drop = jnp.isclose(y[:, c], x_kb, atol=1e-5)
        assert bool(jnp.all(is_kept | is_drop))
        # with keep-prob 0.5 over 512 pixels, both outcomes must occur
        assert bool(jnp.any(is_kept & ~is_drop))
        assert bool(jnp.any(is_drop & ~is_kept))

    print("KERNEL_OK")
</pallas_src>

<mosaic_0001>
module attributes {stable_mosaic.version = 11 : i64} {
  func.func @_uniform_dropout_kernel(%arg0: i32, %arg1: memref<1xi32, #tpu.memory_space<smem>>, %arg2: memref<1x2x16x16xf32, #tpu.memory_space<vmem>>, %arg3: memref<1x2x16x16xf32, #tpu.memory_space<vmem>>) attributes {dimension_semantics = [#tpu.dimension_semantics<parallel>], iteration_bounds = array<i64: 2>, scalar_prefetch = 1 : i64, scratch_operands = 0 : i64, tpu.core_type = #tpu.core_type<tc>, window_params = [{transform_indices = @transform_0, window_bounds = array<i64: 1, 2, 16, 16>}, {transform_indices = @transform_1, window_bounds = array<i64: 1, 2, 16, 16>}]} {
    %c0 = arith.constant 0 : index
    %0 = memref.load %arg1[%c0] : memref<1xi32, #tpu.memory_space<smem>>
    %c1_i32 = arith.constant 1 : i32
    %1 = arith.addi %0, %c1_i32 : i32
    %c0_0 = arith.constant 0 : index
    %c0_1 = arith.constant 0 : index
    %c0_2 = arith.constant 0 : index
    %c0_3 = arith.constant 0 : index
    %2 = vector.load %arg2[%c0_0, %c0_1, %c0_2, %c0_3] : memref<1x2x16x16xf32, #tpu.memory_space<vmem>>, vector<1x1x16x16xf32>
    %3 = vector.shape_cast %2 : vector<1x1x16x16xf32> to vector<1x16x16xf32>
    %c0_4 = arith.constant 0 : index
    %c1 = arith.constant 1 : index
    %c0_5 = arith.constant 0 : index
    %c0_6 = arith.constant 0 : index
    %4 = vector.load %arg2[%c0_4, %c1, %c0_5, %c0_6] : memref<1x2x16x16xf32, #tpu.memory_space<vmem>>, vector<1x1x16x16xf32>
    %5 = vector.shape_cast %4 : vector<1x1x16x16xf32> to vector<1x16x16xf32>
    %6 = arith.addf %3, %5 : vector<1x16x16xf32>
    %7 = vector.extract_strided_slice %6 {offsets = [0, 1, 0], sizes = [1, 1, 16], strides = [1, 1, 1]} : vector<1x16x16xf32> to vector<1x1x16xf32>
    %8 = vector.extract_strided_slice %6 {offsets = [0, 14, 0], sizes = [1, 1, 16], strides = [1, 1, 1]} : vector<1x16x16xf32> to vector<1x1x16xf32>
    %9 = tpu.concatenate %7, %6, %8 in 1 : vector<1x1x16xf32>, vector<1x16x16xf32>, vector<1x1x16xf32> -> vector<1x18x16xf32>
    %10 = vector.extract_strided_slice %9 {offsets = [0, 0, 1], sizes = [1, 18, 1], strides = [1, 1, 1]} : vector<1x18x16xf32> to vector<1x18x1xf32>
    %11 = vector.extract_strided_slice %9 {offsets = [0, 0, 14], sizes = [1, 18, 1], strides = [1, 1, 1]} : vector<1x18x16xf32> to vector<1x18x1xf32>
    %12 = tpu.concatenate %10, %9, %11 in 2 : vector<1x18x1xf32>, vector<1x18x16xf32>, vector<1x18x1xf32> -> vector<1x18x18xf32>
    %13 = vector.extract_strided_slice %12 {offsets = [0, 0, 1], sizes = [1, 18, 16], strides = [1, 1, 1]} : vector<1x18x18xf32> to vector<1x18x16xf32>
    %cst = arith.constant 2.000000e+00 : f32
    %14 = vector.broadcast %cst : f32 to vector<1x18x16xf32>
    %15 = arith.mulf %14, %13 : vector<1x18x16xf32>
    %16 = vector.extract_strided_slice %12 {offsets = [0, 0, 0], sizes = [1, 18, 16], strides = [1, 1, 1]} : vector<1x18x18xf32> to vector<1x18x16xf32>
    %17 = arith.subf %15, %16 : vector<1x18x16xf32>
    %18 = vector.extract_strided_slice %12 {offsets = [0, 0, 2], sizes = [1, 18, 16], strides = [1, 1, 1]} : vector<1x18x18xf32> to vector<1x18x16xf32>
    %19 = arith.subf %17, %18 : vector<1x18x16xf32>
    %20 = vector.extract_strided_slice %19 {offsets = [0, 0, 0], sizes = [1, 16, 16], strides = [1, 1, 1]} : vector<1x18x16xf32> to vector<1x16x16xf32>
    %21 = vector.extract_strided_slice %19 {offsets = [0, 2, 0], sizes = [1, 16, 16], strides = [1, 1, 1]} : vector<1x18x16xf32> to vector<1x16x16xf32>
    %22 = arith.addf %20, %21 : vector<1x16x16xf32>
    %cst_7 = arith.constant 2.500000e-01 : f32
    %23 = vector.broadcast %cst_7 : f32 to vector<1x16x16xf32>
    %24 = arith.mulf %23, %22 : vector<1x16x16xf32>
    %25 = vector.extract_strided_slice %12 {offsets = [0, 1, 0], sizes = [1, 16, 16], strides = [1, 1, 1]} : vector<1x18x18xf32> to vector<1x16x16xf32>
    %26 = vector.extract_strided_slice %12 {offsets = [0, 1, 2], sizes = [1, 16, 16], strides = [1, 1, 1]} : vector<1x18x18xf32> to vector<1x16x16xf32>
    %27 = arith.addf %25, %26 : vector<1x16x16xf32>
    %cst_8 = arith.constant 5.000000e-01 : f32
    %28 = vector.broadcast %cst_8 : f32 to vector<1x16x16xf32>
    %29 = arith.mulf %28, %27 : vector<1x16x16xf32>
    %30 = arith.addf %24, %29 : vector<1x16x16xf32>
    %c1_i32_9 = arith.constant 1 : i32
    %31 = arith.muli %arg0, %c1_i32_9 : i32
    %c0_i32 = arith.constant 0 : i32
    %32 = arith.addi %31, %c0_i32 : i32
    %33 = tpu.iota {dimensions = array<i32: 0>} : vector<16x16xi32>
    %34 = tpu.iota {dimensions = array<i32: 1>} : vector<16x16xi32>
    %c16_i32 = arith.constant 16 : i32
    %35 = arith.muli %32, %c16_i32 : i32
    %36 = vector.broadcast %35 : i32 to vector<16x16xi32>
    %37 = arith.addi %36, %33 : vector<16x16xi32>
    %c16_i32_10 = arith.constant 16 : i32
    %38 = vector.broadcast %c16_i32_10 : i32 to vector<16x16xi32>
    %39 = arith.muli %37, %38 : vector<16x16xi32>
    %40 = arith.addi %39, %34 : vector<16x16xi32>
    %c-1640531527_i32 = arith.constant -1640531527 : i32
    %41 = arith.muli %1, %c-1640531527_i32 : i32
    %42 = vector.broadcast %41 : i32 to vector<16x16xi32>
    %43 = arith.addi %40, %42 : vector<16x16xi32>
    %c16_i32_11 = arith.constant 16 : i32
    %44 = vector.broadcast %c16_i32_11 : i32 to vector<16x16xi32>
    %45 = arith.shrui %43, %44 : vector<16x16xi32>
    %46 = arith.xori %43, %45 : vector<16x16xi32>
    %c2146121005_i32 = arith.constant 2146121005 : i32
    %47 = vector.broadcast %c2146121005_i32 : i32 to vector<16x16xi32>
    %48 = arith.muli %46, %47 : vector<16x16xi32>
    %c15_i32 = arith.constant 15 : i32
    %49 = vector.broadcast %c15_i32 : i32 to vector<16x16xi32>
    %50 = arith.shrui %48, %49 : vector<16x16xi32>
    %51 = arith.xori %48, %50 : vector<16x16xi32>
    %c-2073254261_i32 = arith.constant -2073254261 : i32
    %52 = vector.broadcast %c-2073254261_i32 : i32 to vector<16x16xi32>
    %53 = arith.muli %51, %52 : vector<16x16xi32>
    %c16_i32_12 = arith.constant 16 : i32
    %54 = vector.broadcast %c16_i32_12 : i32 to vector<16x16xi32>
    %55 = arith.shrui %53, %54 : vector<16x16xi32>
    %56 = arith.xori %53, %55 : vector<16x16xi32>
    %c16777215_i32 = arith.constant 16777215 : i32
    %57 = vector.broadcast %c16777215_i32 : i32 to vector<16x16xi32>
    %58 = arith.andi %56, %57 : vector<16x16xi32>
    %c8388608_i32 = arith.constant 8388608 : i32
    %59 = vector.broadcast %c8388608_i32 : i32 to vector<16x16xi32>
    %60 = arith.cmpi ult, %58, %59 : vector<16x16xi32>
    %c0_13 = arith.constant 0 : index
    %c0_14 = arith.constant 0 : index
    %c0_15 = arith.constant 0 : index
    %c0_16 = arith.constant 0 : index
    %61 = vector.load %arg2[%c0_13, %c0_14, %c0_15, %c0_16] : memref<1x2x16x16xf32, #tpu.memory_space<vmem>>, vector<1x1x16x16xf32>
    %62 = vector.shape_cast %61 : vector<1x1x16x16xf32> to vector<16x16xf32>
    %63 = vector.shape_cast %30 : vector<1x16x16xf32> to vector<16x16xf32>
    %64 = arith.select %60, %62, %63 : vector<16x16xi1>, vector<16x16xf32>
    %c0_17 = arith.constant 0 : index
    %c0_18 = arith.constant 0 : index
    %c0_19 = arith.constant 0 : index
    %c0_20 = arith.constant 0 : index
    %65 = vector.load %arg3[%c0_17, %c0_18, %c0_19, %c0_20] : memref<1x2x16x16xf32, #tpu.memory_space<vmem>>, vector<1x1x16x16xf32>
    %66 = vector.shape_cast %65 : vector<1x1x16x16xf32> to vector<16x16xf32>
    %67 = vector.shape_cast %64 : vector<16x16xf32> to vector<1x1x16x16xf32>
    tpu.vector_store %arg3[%c0_17, %c0_18, %c0_19, %c0_20], %67 {strides = array<i32>} : memref<1x2x16x16xf32, #tpu.memory_space<vmem>>, vector<1x1x16x16xf32>,
    %c0_21 = arith.constant 0 : index
    %c1_22 = arith.constant 1 : index
    %c0_23 = arith.constant 0 : index
    %c0_24 = arith.constant 0 : index
    %68 = vector.load %arg2[%c0_21, %c1_22, %c0_23, %c0_24] : memref<1x2x16x16xf32, #tpu.memory_space<vmem>>, vector<1x1x16x16xf32>
    %69 = vector.shape_cast %68 : vector<1x1x16x16xf32> to vector<16x16xf32>
    %70 = vector.shape_cast %30 : vector<1x16x16xf32> to vector<16x16xf32>
    %71 = arith.select %60, %69, %70 : vector<16x16xi1>, vector<16x16xf32>
    %c0_25 = arith.constant 0 : index
    %c1_26 = arith.constant 1 : index
    %c0_27 = arith.constant 0 : index
    %c0_28 = arith.constant 0 : index
    %72 = vector.load %arg3[%c0_25, %c1_26, %c0_27, %c0_28] : memref<1x2x16x16xf32, #tpu.memory_space<vmem>>, vector<1x1x16x16xf32>
    %73 = vector.shape_cast %72 : vector<1x1x16x16xf32> to vector<16x16xf32>
    %74 = vector.shape_cast %71 : vector<16x16xf32> to vector<1x1x16x16xf32>
    tpu.vector_store %arg3[%c0_25, %c1_26, %c0_27, %c0_28], %74 {strides = array<i32>} : memref<1x2x16x16xf32, #tpu.memory_space<vmem>>, vector<1x1x16x16xf32>,
    return
  }
  func.func @transform_0(%arg0: i32, %arg1: memref<1xi32, #tpu.memory_space<smem>>) -> (i32, i32, i32, i32) {
    %c0_i32 = arith.constant 0 : i32
    %c0_i32_0 = arith.constant 0 : i32
    %c0_i32_1 = arith.constant 0 : i32
    %c0_i32_2 = arith.constant 0 : i32
    return %arg0, %c0_i32, %c0_i32_0, %c0_i32_1 : i32, i32, i32, i32
  }
  func.func @transform_1(%arg0: i32, %arg1: memref<1xi32, #tpu.memory_space<smem>>) -> (i32, i32, i32, i32) {
    %c0_i32 = arith.constant 0 : i32
    %c0_i32_0 = arith.constant 0 : i32
    %c0_i32_1 = arith.constant 0 : i32
    %c0_i32_2 = arith.constant 0 : i32
    return %arg0, %c0_i32, %c0_i32_0, %c0_i32_1 : i32, i32, i32, i32
  }
}

</mosaic_0001>

<llo_original>
// kernel: tpu_custom_call.1
$region0: #{tpu_custom_call.1}
  #allocation0 [shape = 'u32[]', space=smem, size = 0x4, offset = 0x4, fixed_abs, tag = 'smem constant byte address 0x4 - core index']
  #allocation1 [shape = 'u32[144,128]{1,0:T(1,128)}', space=vmem, size = 0x12000, scoped, tag = 'internal scratch']
  #allocation2 [shape = 's32[1]{0}', space=sflag, size = 0x4, scoped, tag = 'scoped memory for tpu_custom_call.1']
  #allocation3 [shape = 's32[1]{0:T(128)S(6)}', space=smem, size = 0x200, scoped, tag = 'prefetched SMEM operand 0']
  %s0 = inlined_call_operand.<no memory space> [shape: s32[1], index: 0, kind: input, shape index: {}]
  %s1 = inlined_call_operand.hbm [shape: f32[2,4,16,16], index: 1, kind: input, shape index: {}, may-alias: {1,2}]
  %s2 = inlined_call_operand.hbm [shape: f32[2,4,16,16], index: 2, kind: output, shape index: {}, may-alias: {1,2}]
  %s3 = sld [smem:[#allocation0]]
  $region41: #{tpu_custom_call.1} parent=0
    _
  %s5 = ssub.s32 1, %s3
  %s6 = scalar_select 0, %s5, %s3
  %7 = sst [smem:[#allocation3]] %s0
  $region1: #{tpu_custom_call.1} parent=0
    #allocation4 [shape = 'u8[32768]{0}', space=vmem, size = 0x8000, scoped, tag = 'input window, operand 1']
    #allocation5 [shape = 's32[2]{0}', space=sflag, size = 0x8, scoped, tag = 'scoped memory for tpu_custom_call.1']
    #allocation6 [shape = 's32[2]{0}', space=sflag, size = 0x8, scoped, tag = 'scoped memory for tpu_custom_call.1']
    #allocation7 [shape = 'u8[32768]{0}', space=vmem, size = 0x8000, scoped, tag = 'output window, operand 0']
    %8 = vsyncpa [#allocation5], 0
    %s9 = scalar_lea.sflag [#allocation5], 1
    %10 = vsyncpa %s9, 0
    %11 = vsyncpa [#allocation6], 0
    %s12 = scalar_lea.sflag [#allocation6], 1
    %13 = vsyncpa %s12, 0
    loop: start=0, step=1, limit=4
    $region2: #{tpu_custom_call.1} parent=1 // loop_pre_header
      _
    $region3: #{tpu_custom_call.1} parent=1 // loop_header
      %s15 = sphi 0, %s19
      %p16 = scmp.ge.s32.totalorder %s15, 4
      %s25 = sphi 0, %s27
      %s28 = sphi 0, %s25
      %s29 = sphi 0, %s28
      %s45 = sphi 0, %s29
      %s51 = sphi 0, %s53
      %s54 = sphi 0, %s51
      %s55 = sphi 0, %s54
      %s71 = sphi 0, %s55
    $region4: #{tpu_custom_call.1} parent=1 // loop_header_branch
      %18 = sbr.rel (%p16) target = $region8
    $region5: #{tpu_custom_call.1} parent=1 // loop_body
      %s20 = ssub.s32 %s15, 1
      %s21 = ssub.s32 %s15, 2
      %s22 = sadd.s32 %s15, 1
      %s23 = ssub.s32 %s15, %s22
      %p24 = scmp.eq.s32.totalorder %s23, 0
      %s26 = sadd.s32 %s25, 1
      %s27 = scalar_select %p24, %s25, %s26
      %p30 = pneg %p24
      %p31 = scmp.eq.s32.totalorder %s15, 1
      %p32 = por %p30, %p31
      %p33 = scmp.ne.s32.totalorder %s25, %s28
      %p34 = scmp.eq.s32.totalorder %s15, 0
      %p35 = por %p33, %p34
      %p36 = scmp.ne.s32.totalorder %s25, %s28
      %p37 = scmp.eq.s32.totalorder %s20, 1
      %p38 = por %p36, %p37
      %p39 = scmp.ne.s32.totalorder %s28, %s29
      %p40 = scmp.eq.s32.totalorder %s20, 0
      %p41 = por %p39, %p40
      %p42 = scmp.ne.s32.totalorder %s28, %s29
      %p43 = scmp.eq.s32.totalorder %s21, 1
      %p44 = por %p42, %p43
      %p46 = scmp.ne.s32.totalorder %s29, %s45
      %p47 = scmp.eq.s32.totalorder %s21, 0
      %p48 = por %p46, %p47
      %s49 = ssub.s32 %s15, %s22
      %p50 = scmp.eq.s32.totalorder %s49, 0
      %s52 = sadd.s32 %s51, 1
      %s53 = scalar_select %p50, %s51, %s52
      %p56 = pneg %p50
      %p57 = scmp.eq.s32.totalorder %s15, 1
      %p58 = por %p56, %p57
      %p59 = scmp.ne.s32.totalorder %s51, %s54
      %p60 = scmp.eq.s32.totalorder %s15, 0
      %p61 = por %p59, %p60
      %p62 = scmp.ne.s32.totalorder %s51, %s54
      %p63 = scmp.eq.s32.totalorder %s20, 1
      %p64 = por %p62, %p63
      %p65 = scmp.ne.s32.totalorder %s54, %s55
      %p66 = scmp.eq.s32.totalorder %s20, 0
      %p67 = por %p65, %p66
      %p68 = scmp.ne.s32.totalorder %s54, %s55
      %p69 = scmp.eq.s32.totalorder %s21, 1
      %p70 = por %p68, %p69
      %p72 = scmp.ne.s32.totalorder %s55, %s71
      %p73 = scmp.eq.s32.totalorder %s21, 0
      %p74 = por %p72, %p73
      %p75 = scmp.le.s32.totalorder 1, %s15
      %p76 = scmp.lt.s32.totalorder %s15, 3
      %p77 = pnand %p75, %p76
      %p78 = pneg %p77
      // Predicated region
      $region9: #{tpu_custom_call.1} parent=5 // pred_check
        _
      $region10: #{tpu_custom_call.1} parent=5 // pred_check_branch
        %80 = sbr.rel (%p77) target = $region12
      $region11: #{tpu_custom_call.1} parent=5 // pred_region
        %s81 = ssub.s32 %s15, 1
      $region12: #{tpu_custom_call.1} parent=5 // pred_fallthru
        _
      %p82 = scmp.lt.s32.totalorder %s15, 2
      // Predicated region
      $region13: #{tpu_custom_call.1} parent=5 // pred_check
        %p83 = pneg %p82
      $region14: #{tpu_custom_call.1} parent=5 // pred_check_branch
        %85 = sbr.rel (%p83) target = $region16
      $region15: #{tpu_custom_call.1} parent=5 // pred_region
        // Predicated region
        $region17: #{tpu_custom_call.1} parent=15 // pred_check
          %p86 = pneg %p35
        $region18: #{tpu_custom_call.1} parent=15 // pred_check_branch
          %88 = sbr.rel (%p86) target = $region20
        $region19: #{tpu_custom_call.1} parent=15 // pred_region
          %s89 = sand.u32 %s25, 1
          %s90 = scalar_lea.sflag [#allocation5], %s89
          %s91 = sand.u32 %s25, 1
          %s92 = smul.addr %s91, 32
          %s93 = scalar_lea.vmem [#allocation4], %s92
          %s95 = ssub.s32 512, 512
          %96 = vsyncadd %s90, %s95
          %s97 = smul.addr %s15, 8
          %s98 = smul.addr %s97, 128
          %s99 = scalar_lea.hbm %s1, %s98
          %s100 = sshll.u32 %s93, 4
          %s101 = int_to_ptr.vmem [resolvable:$true] %s100
          %106 = dma.hbm_to_vmem [thread:$0]  %s99, 512, %s101, %s90, 128, 128, 8
        $region20: #{tpu_custom_call.1} parent=15 // pred_fallthru
          _
      $region16: #{tpu_custom_call.1} parent=5 // pred_fallthru
        _
      %p107 = scmp.le.s32.totalorder 1, %s15
      %p108 = scmp.lt.s32.totalorder %s15, 3
      %p109 = pnand %p107, %p108
      %p110 = pneg %p109
      // Predicated region
      $region21: #{tpu_custom_call.1} parent=5 // pred_check
        _
      $region22: #{tpu_custom_call.1} parent=5 // pred_check_branch
        %112 = sbr.rel (%p109) target = $region24
      $region23: #{tpu_custom_call.1} parent=5 // pred_region
        %s113 = ssub.s32 %s15, 1
        %s114 = sand.u32 %s28, 1
        %s115 = scalar_lea.sflag [#allocation5], %s114
        %s116 = sand.u32 %s28, 1
        %s117 = smul.addr %s116, 32
        %s118 = scalar_lea.vmem [#allocation4], %s117
        // Predicated region
        $region25: #{tpu_custom_call.1} parent=23 // pred_check
          %p119 = pneg %p41
        $region26: #{tpu_custom_call.1} parent=23 // pred_check_branch
          %121 = sbr.rel (%p119) target = $region28
        $region27: #{tpu_custom_call.1} parent=23 // pred_region
          %122 = dma.done %s115, 512
        $region28: #{tpu_custom_call.1} parent=23 // pred_fallthru
          _
        %s123 = sand.u32 %s28, 1
        %s124 = scalar_lea.sflag [#allocation5], %s123
        %s125 = sand.u32 %s28, 1
        %s126 = smul.addr %s125, 32
        %s127 = scalar_lea.vmem [#allocation4], %s126
        %p128 = pneg %p41
        %p129 = pneg %p38
        %p130 = pneg %p67
        %p131 = pneg %p64
        %s132 = sand.u32 %s54, 1
        %s133 = scalar_lea.sflag [#allocation6], %s132
        %s134 = sand.u32 %s54, 1
        %s135 = smul.addr %s134, 32
        %s136 = scalar_lea.vmem [#allocation7], %s135
        %s137 = sld [smem:[#allocation3]]
        %s138 = sadd.s32 %s137, 1
        %v139 = vld [vmem:[%s118] sm:$0xff]
        %v140 = vld [vmem:[%s118 + $0x8] sm:$0xff]
        %s141 = scalar_lea.vmem %s118, 16 [#allocation4]
        %v142 = vld [vmem:[%s141] sm:$0xff]
        %v143 = vld [vmem:[%s141 + $0x8] sm:$0xff]
        %v144 = vadd.f32 %v139, %v142
        %v145 = vadd.f32 %v140, %v143
        %v147 = vrot.slane %v144, 1
        %vm150 = vcmask 1040384
        %v151 = vrot.slane %v144, 7
        %v152 = vrot.slane %v145, 7
        %v153 = vsel %vm150, %v151, %v152
        %v156 = vrot.slane %v145, 5
        %v158 = vsel %vm150, %v147, %v151
        %v159 = vsel %vm150, %v152, %v156
        %162 = vrot.lane.b32.xlu0 %v158, 127
        %v163 = vpop.permute.xlu0 %162
        %164 = vrot.lane.b32.xlu0 %v153, 127
        %v165 = vpop.permute.xlu0 %164
        %166 = vrot.lane.b32.xlu0 %v159, 127
        %v167 = vpop.permute.xlu0 %166
        %171 = vrot.lane.b32.xlu0 %v158, 1
        %v172 = vpop.permute.xlu0 %171
        %173 = vrot.lane.b32.xlu0 %v153, 1
        %v174 = vpop.permute.xlu0 %173
        %175 = vrot.lane.b32.xlu0 %v159, 1
        %v176 = vpop.permute.xlu0 %175
        %180 = vrot.lane.b32.xlu0 %v158, 3
        %v181 = vpop.permute.xlu0 %180
        %182 = vrot.lane.b32.xlu0 %v153, 3
        %v183 = vpop.permute.xlu0 %182
        %184 = vrot.lane.b32.xlu0 %v159, 3
        %v185 = vpop.permute.xlu0 %184
        %vm189 = vcmask 7168
        %v190 = vsel %vm189, %v163, %v172
        %v191 = vsel %vm189, %v165, %v174
        %v192 = vsel %vm189, %v167, %v176
        %vm193 = vcmask 138240
        %v194 = vsel %vm193, %v190, %v181
        %v195 = vsel %vm193, %v191, %v183
        %v196 = vsel %vm193, %v192, %v185
        %v197 = vmul.f32 %v194, 2.0
        %v198 = vmul.f32 %v195, 2.0
        %v199 = vmul.f32 %v196, 2.0
        %203 = vrot.lane.b32.xlu0 %v194, 1
        %v204 = vpop.permute.xlu0 %203
        %205 = vrot.lane.b32.xlu0 %v195, 1
        %v206 = vpop.permute.xlu0 %205
        %207 = vrot.lane.b32.xlu0 %v196, 1
        %v208 = vpop.permute.xlu0 %207
        %v212 = vsub.f32 %v197, %v204
        %v213 = vsub.f32 %v198, %v206
        %v214 = vsub.f32 %v199, %v208
        %215 = vrot.lane.b32.xlu0 %v194, 127
        %v216 = vpop.permute.xlu0 %215
        %217 = vrot.lane.b32.xlu0 %v195, 127
        %v218 = vpop.permute.xlu0 %217
        %219 = vrot.lane.b32.xlu0 %v196, 127
        %v220 = vpop.permute.xlu0 %219
        %v224 = vsub.f32 %v212, %v216
        %v225 = vsub.f32 %v213, %v218
        %v226 = vsub.f32 %v214, %v220
        %vm230 = vcmask 1045504
        %v231 = vrot.slane %v224, 2
        %v232 = vrot.slane %v225, 2
        %v233 = vsel %vm230, %v231, %v232
        %v234 = vrot.slane %v226, 2
        %v235 = vsel %vm230, %v232, %v234
        %v238 = vadd.f32 %v224, %v233
        %v239 = vadd.f32 %v225, %v235
        %v240 = vmul.f32 %v238, 0.25
        %v241 = vmul.f32 %v239, 0.25
        %242 = vrot.lane.b32.xlu0 %v194, 126
        %v243 = vpop.permute.xlu0 %242
        %244 = vrot.lane.b32.xlu0 %v195, 126
        %v245 = vpop.permute.xlu0 %244
        %246 = vrot.lane.b32.xlu0 %v196, 126
        %v247 = vpop.permute.xlu0 %246
        %v251 = vadd.f32 %v194, %v243
        %v252 = vadd.f32 %v195, %v245
        %v253 = vadd.f32 %v196, %v247
        %v254 = vmul.f32 %v251, 0.5
        %v255 = vmul.f32 %v252, 0.5
        %v256 = vmul.f32 %v253, 0.5
        %vm260 = vcmask 1046528
        %v261 = vrot.slane %v254, 1
        %v262 = vrot.slane %v255, 1
        %v263 = vsel %vm260, %v261, %v262
        %v264 = vrot.slane %v256, 1
        %v265 = vsel %vm260, %v262, %v264
        %266 = vrot.lane.b32.xlu0 %v263, 1
        %v267 = vpop.permute.xlu0 %266
        %268 = vrot.lane.b32.xlu0 %v265, 1
        %v269 = vpop.permute.xlu0 %268
        %v272 = vadd.f32 %v240, %v267
        %v273 = vadd.f32 %v241, %v269
        %v274 = vlaneseq
        %v275 = vshrl.u32 %v274, 7
        %v276 = vadd.s32 %v275, 8
        %v277 = vlaneseq
        %v278 = vand.u32 %v277, 127
        %s279 = smul.u32 %s20, 16
        %v280 = vstv %s279
        %v281 = vadd.s32 %v280, %v275
        %v282 = vadd.s32 %v280, %v276
        %v283 = vmul.u32 %v281, 16
        %v284 = vmul.u32 %v282, 16
        %v285 = vadd.s32 %v283, %v278
        %v286 = vadd.s32 %v284, %v278
        %s287 = smul.u32 %s138, 2654435769
        %v288 = vstv %s287
        %v289 = vadd.s32 %v285, %v288
        %v290 = vadd.s32 %v286, %v288
        %v291 = vshrl.u32 %v289, 16
        %v292 = vshrl.u32 %v290, 16
        %v293 = vxor.u32 %v289, %v291
        %v294 = vxor.u32 %v290, %v292
        %v295 = vmul.u32 %v293, 2146121005
        %v296 = vmul.u32 %v294, 2146121005
        %v297 = vshrl.u32 %v295, 15
        %v298 = vshrl.u32 %v296, 15
        %v299 = vxor.u32 %v295, %v297
        %v300 = vxor.u32 %v296, %v298
        %v301 = vmul.u32 %v299, 2221713035
        %v302 = vmul.u32 %v300, 2221713035
        %v303 = vshrl.u32 %v301, 16
        %v304 = vshrl.u32 %v302, 16
        %v305 = vxor.u32 %v301, %v303
        %v306 = vxor.u32 %v302, %v304
        %v307 = vand.u32 %v305, 16777215
        %v308 = vand.u32 %v306, 16777215
        %vm309 = vcmp.lt.u32.totalorder %v307, 8388608
        %vm310 = vcmp.lt.u32.totalorder %v308, 8388608
        %313 = vrot.lane.b32.xlu0 %v272, 127
        %v314 = vpop.permute.xlu0 %313
        %315 = vrot.lane.b32.xlu0 %v273, 127
        %v316 = vpop.permute.xlu0 %315
        %v319 = vsel %vm309, %v139, %v314
        %v320 = vsel %vm310, %v140, %v316
        %vm321 = vcmask 130048
        %322 = vst.msk [vmem:[%s136] sm:$0xff] %vm321, %v319
        %323 = vst.msk [vmem:[%s136 + $0x8] sm:$0xff] %vm321, %v320
        %v324 = vld [vmem:[%s141] sm:$0xff]
        %v325 = vld [vmem:[%s141 + $0x8] sm:$0xff]
        %v326 = vsel %vm309, %v324, %v314
        %v327 = vsel %vm310, %v325, %v316
        %s328 = scalar_lea.vmem %s136, 16 [#allocation7]
        %329 = vst.msk [vmem:[%s328] sm:$0xff] %vm321, %v326
        %330 = vst.msk [vmem:[%s328 + $0x8] sm:$0xff] %vm321, %v327
        %s331 = sand.u32 %s54, 1
        %s332 = scalar_lea.sflag [#allocation6], %s331
        %s333 = sand.u32 %s54, 1
        %s334 = smul.addr %s333, 32
        %s335 = scalar_lea.vmem [#allocation7], %s334
        // Predicated region
        $region29: #{tpu_custom_call.1} parent=23 // pred_check
          %p336 = pneg %p64
        $region30: #{tpu_custom_call.1} parent=23 // pred_check_branch
          %338 = sbr.rel (%p336) target = $region32
        $region31: #{tpu_custom_call.1} parent=23 // pred_region
          %s340 = ssub.s32 512, 512
          %341 = vsyncadd %s332, %s340
          %s342 = smul.addr %s20, 8
          %s343 = smul.addr %s342, 128
          %s344 = scalar_lea.hbm %s2, %s343
          %s345 = sshll.u32 %s335, 4
          %s346 = int_to_ptr.vmem [resolvable:$true] %s345
          %351 = dma.vmem_to_hbm [thread:$0]  %s346, 512, %s344, %s332, 128, 128, 8
        $region32: #{tpu_custom_call.1} parent=23 // pred_fallthru
          _
      $region24: #{tpu_custom_call.1} parent=5 // pred_fallthru
        _
      %p352 = scmp.le.s32.totalorder 2, %s15
      // Predicated region
      $region33: #{tpu_custom_call.1} parent=5 // pred_check
        %p353 = pneg %p352
      $region34: #{tpu_custom_call.1} parent=5 // pred_check_branch
        %355 = sbr.rel (%p353) target = $region36
      $region35: #{tpu_custom_call.1} parent=5 // pred_region
        %s356 = ssub.s32 %s15, 2
        // Predicated region
        $region37: #{tpu_custom_call.1} parent=35 // pred_check
          %p357 = pneg %p70
        $region38: #{tpu_custom_call.1} parent=35 // pred_check_branch
          %359 = sbr.rel (%p357) target = $region40
        $region39: #{tpu_custom_call.1} parent=35 // pred_region
          %s360 = sand.u32 %s55, 1
          %s361 = scalar_lea.sflag [#allocation6], %s360
          %s362 = sand.u32 %s55, 1
          %s363 = smul.addr %s362, 32
          %s364 = scalar_lea.vmem [#allocation7], %s363
          %365 = dma.done %s361, 512
        $region40: #{tpu_custom_call.1} parent=35 // pred_fallthru
          _
      $region36: #{tpu_custom_call.1} parent=5 // pred_fallthru
        _
    $region6: #{tpu_custom_call.1} parent=1 // loop_footer
      %s19 = sadd.s32 1, %s15
    $region7: #{tpu_custom_call.1} parent=1 // loop_footer_branch
      %14 = sbr.rel target = $region3
    $region8: #{tpu_custom_call.1} parent=1 // loop_exit
      _
    %366 = vsyncpa [#allocation5], 1
    %s367 = scalar_lea.sflag [#allocation5], 1
    %368 = vsyncpa %s367, 1
    %369 = vsyncpa [#allocation6], 1
    %s370 = scalar_lea.sflag [#allocation6], 1
    %371 = vsyncpa %s370, 1

</llo_original>
